<compile_context>
chip_gen: v5e
topology: v5e:2x2
jax: 0.10.0
libtpu: 0.0.40
codegen_flags: <defaults>
</compile_context>

<pallas_src>
import jax
import jax.numpy as jnp
from jax import lax
from jax.experimental import pallas as pl
from jax.experimental.pallas import tpu as pltpu

Q = 21                 # alphabet size (module default q=21)
LAMBDA_H = 0.0014      # module default lambda_h
THRESHOLD = 3.5        # get_cmap threshold


# ----------------------------------------------------------------------------
# Glue: AB-model chain builder (stand-in for the external Angles2CoordsAB op).
# TODO(synk): exact Angles2CoordsAB / Coords2Pairs CUDA extensions are not
# available; a standard AB off-lattice chain construction (unit bonds,
# cumulative rotation by (alpha, beta)) is used instead.
# ----------------------------------------------------------------------------
def _angles_to_coords(alpha, beta):
    ca, sa = jnp.cos(alpha), jnp.sin(alpha)
    cb, sb = jnp.cos(beta), jnp.sin(beta)
    R = jnp.stack(
        [
            jnp.stack([ca, sa, jnp.zeros_like(ca)], axis=-1),
            jnp.stack([sa * cb, -ca * cb, sb], axis=-1),
            jnp.stack([sa * sb, -ca * sb, -cb], axis=-1),
        ],
        axis=-2,
    )                                                   # (L-1, 3, 3)

    def step(carry, Rk):
        r, Rcum = carry
        Rcum = Rcum @ Rk
        r_new = r + Rcum[:, 0]
        return (r_new, Rcum), r_new

    (_, _), rs = lax.scan(step, (jnp.zeros(3), jnp.eye(3)), R)
    coords = jnp.concatenate([jnp.zeros((1, 3)), rs], axis=0)   # (L, 3)
    return coords.astype(jnp.float32)


# ----------------------------------------------------------------------------
# Pallas kernel: one column tile of the contact map + pseudo-log-likelihood.
#
# Grid: (LP // TN,) over column tiles of the (LP, LP) contact map.
# All reductions accumulate into (1, 1) VMEM scratch; output written on the
# last tile.  Padding rows/columns (when L is padded to LP) are masked with
# the true length carried in lt_ref.
# ----------------------------------------------------------------------------
def _loss_kernel(lt_ref, wb_ref, sigf_ref, sigt_ref, a_ref, bt_ref, k_ref,
                 h_ref, out_ref, nacc_ref, dacc_ref, racc_ref):
    jt = pl.program_id(0)
    nt = pl.num_programs(0)
    LP = a_ref.shape[0]
    TN = bt_ref.shape[1]
    Qn = k_ref.shape[0]

    @pl.when(jt == 0)
    def _init():
        nacc_ref[...] = jnp.zeros_like(nacc_ref)
        dacc_ref[...] = jnp.zeros_like(dacc_ref)
        racc_ref[...] = jnp.zeros_like(racc_ref)

    l_true = lt_ref[...]                                  # (1, 1) int32

    # ---- contact-map column tile Jir[:, j0:j0+TN] via augmented Gram matmul
    # A[i]   = [x, y, z, |c_i|^2, 1, 0, 0, 0]
    # Bt[:,j] = [-2x, -2y, -2z, 1, |c_j|^2, 0, 0, 0]
    # => d2[i, j] = |c_i|^2 + |c_j|^2 - 2 c_i . c_j
    # Kept in f32: bf16 here would wreck the cancellation for nearby residues.
    col0 = jt * TN
    gi = lax.broadcasted_iota(jnp.int32, (LP, TN), 0)
    gj = col0 + lax.broadcasted_iota(jnp.int32, (LP, TN), 1)
    d2 = jnp.dot(a_ref[...], bt_ref[...],
                 preferred_element_type=jnp.float32)      # (LP, TN)
    d2 = jnp.maximum(d2, 0.0)
    dist = jnp.sqrt(d2 + 1e-4)
    # cmap = 1 - sigmoid(dist - thr) = 1 / (1 + exp(dist - thr)); EUP reciprocal.
    z = jnp.minimum(dist - THRESHOLD, 30.0)               # avoid exp overflow; cmap ~ 0 there
    cmap = pl.reciprocal(1.0 + jnp.exp(z), approx=True)
    valid = (gi < l_true) & (gj < l_true) & (gi != gj)    # off-diagonal + unpadded
    jir = jnp.where(valid, cmap, 0.0).astype(jnp.bfloat16)

    # ---- Kli = K[:, sigma] as a one-hot matmul (tiny: (q,q)x(q,LP)) --------
    rows_f = lax.broadcasted_iota(jnp.int32, (Qn, LP), 0)
    s_t_full = (rows_f == sigf_ref[...]).astype(jnp.float32)     # (q, LP) one-hot
    kli = jnp.dot(k_ref[...], s_t_full,
                  preferred_element_type=jnp.float32).astype(jnp.bfloat16)

    # ---- M tile = Kli @ Jir + H  (bf16 x bf16 -> f32 accumulate) -----------
    m = jnp.dot(kli, jir, preferred_element_type=jnp.float32) + h_ref[...]   # (q, TN)

    colv = (col0 + lax.broadcasted_iota(jnp.int32, (1, TN), 1)) < l_true     # (1, TN)

    # one-hot S^T for this column tile (reads M[s_j, j])
    rows_t = lax.broadcasted_iota(jnp.int32, (Qn, TN), 0)
    s_t_tile = (rows_t == sigt_ref[...]).astype(jnp.float32)                 # (q, TN)

    # N partial: sum_j [ sum_i K[s_i, s_j] Jir[i, j] + H[s_j, j] ]
    # == sum_j M[s_j, j] because Jir is symmetric.
    n_col = jnp.sum(s_t_tile * m, axis=0, keepdims=True)                     # (1, TN)
    nacc_ref[...] += jnp.sum(jnp.where(colv, n_col, 0.0), axis=1, keepdims=True)

    # D partial: stable log-sum-exp over the alphabet, per column.
    m_max = jnp.max(m, axis=0, keepdims=True)                                # (1, TN)
    lse = m_max + jnp.log(jnp.sum(jnp.exp(m - m_max), axis=0, keepdims=True))
    dacc_ref[...] += jnp.sum(jnp.where(colv, lse, 0.0), axis=1, keepdims=True)

    # regularizer partial (padded H columns are zero)
    hh = h_ref[...] * h_ref[...]
    racc_ref[...] += jnp.sum(jnp.sum(hh, axis=1, keepdims=True),
                             axis=0, keepdims=True)

    @pl.when(jt == nt - 1)
    def _finalize():
        # N = -nacc ;  total = w_b * (N + D) + lambda_h * sum(H^2)
        total = wb_ref[...] * (dacc_ref[...] - nacc_ref[...]) \
            + LAMBDA_H * racc_ref[...]
        out_ref[...] = total


# ----------------------------------------------------------------------------
# Wrapper
# ----------------------------------------------------------------------------
def log_loss_protein_forward(sigma_i, w_b, params, *, col_tile=None):
    K32 = params["K"].astype(jnp.float32)
    H32 = params["H"].astype(jnp.float32)
    q, L = H32.shape

    # alpha / beta exactly as in get_cmap()
    alpha = jnp.arctan(params["sin_alpha"] / params["cos_alpha"]
                       + 0.001 * jnp.sign(params["cos_alpha"]))
    beta = jnp.arctan(params["sin_beta"] / params["cos_beta"]
                      + 0.001 * jnp.sign(params["cos_beta"]))
    coords = _angles_to_coords(alpha, beta)                     # (L, 3)
    # centring does not change pairwise distances but improves the Gram-trick
    # conditioning (keeps |c|^2 small).
    coords = coords - jnp.mean(coords, axis=0, keepdims=True)

    # --- tiling: single full-width tile for small L, 128/256-wide column
    # tiles (with zero padding + in-kernel masking) for large L.
    if col_tile is None:
        col_tile = L if L <= 512 else 256
    if L <= col_tile:
        TN = LP = L
    else:
        assert col_tile % 128 == 0, "column tile must be a multiple of 128"
        TN = col_tile
        LP = ((L + TN - 1) // TN) * TN
    pad = LP - L

    cp = jnp.pad(coords, ((0, pad), (0, 0)))                    # (LP, 3)
    n2 = jnp.sum(cp * cp, axis=1, keepdims=True)                # (LP, 1)
    one = jnp.ones((LP, 1), jnp.float32)
    zero3 = jnp.zeros((LP, 3), jnp.float32)
    A = jnp.concatenate([cp, n2, one, zero3], axis=1)           # (LP, 8)
    Bt = jnp.concatenate([-2.0 * cp, one, n2, zero3], axis=1).T  # (8, LP)

    sigma_p = jnp.pad(sigma_i.astype(jnp.int32), (0, pad)).reshape(1, LP)
    H_p = jnp.pad(H32, ((0, 0), (0, pad)))                      # (q, LP)

    lt = jnp.full((1, 1), L, dtype=jnp.int32)
    wb = w_b[:1].astype(jnp.float32).reshape(1, 1)

    out = pl.pallas_call(
        _loss_kernel,
        out_shape=jax.ShapeDtypeStruct((1, 1), jnp.float32),
        grid=(LP // TN,),
        in_specs=[
            pl.BlockSpec((1, 1), lambda j: (0, 0)),      # true length L
            pl.BlockSpec((1, 1), lambda j: (0, 0)),      # w_b[0]
            pl.BlockSpec((1, LP), lambda j: (0, 0)),     # sigma (full, for Kli)
            pl.BlockSpec((1, TN), lambda j: (0, j)),     # sigma (column tile)
            pl.BlockSpec((LP, 8), lambda j: (0, 0)),     # augmented coords A
            pl.BlockSpec((8, TN), lambda j: (0, j)),     # augmented coords B^T tile
            pl.BlockSpec((q, q), lambda j: (0, 0)),      # K
            pl.BlockSpec((q, TN), lambda j: (0, j)),     # H column tile
        ],
        out_specs=pl.BlockSpec((1, 1), lambda j: (0, 0)),
        scratch_shapes=[
            pltpu.VMEM((1, 1), jnp.float32),             # N accumulator
            pltpu.VMEM((1, 1), jnp.float32),             # D accumulator
            pltpu.VMEM((1, 1), jnp.float32),             # sum(H^2) accumulator
        ],
        # column-tile axis carries scalar accumulators -> reduction axis.
        compiler_params=pltpu.CompilerParams(
            dimension_semantics=("arbitrary",)),
    )(lt, wb, sigma_p, sigma_p, A, Bt, K32, H_p)

    total = out[0, 0]
    # NOTE: the PyTorch forward does `Lpseudo_noreg = Lpseudo; Lpseudo += reg`
    # (in-place add on an aliased tensor), so BOTH returned scalars include the
    # regularizer.  Reproduced on purpose.
    return total, total


# ----------------------------------------------------------------------------
# Pure-JAX reference (mirrors the PyTorch forward with explicit gathers)
# ----------------------------------------------------------------------------
def _reference(sigma_i, w_b, params):
    K = params["K"].astype(jnp.float32)
    H = params["H"].astype(jnp.float32)
    L = H.shape[1]
    alpha = jnp.arctan(params["sin_alpha"] / params["cos_alpha"]
                       + 0.001 * jnp.sign(params["cos_alpha"]))
    beta = jnp.arctan(params["sin_beta"] / params["cos_beta"]
                      + 0.001 * jnp.sign(params["cos_beta"]))
    coords = _angles_to_coords(alpha, beta)
    diff = coords[:, None, :] - coords[None, :, :]
    dist = jnp.sqrt(jnp.sum(diff * diff, axis=-1) + 1e-4)
    cmap = 1.0 - jax.nn.sigmoid(dist - THRESHOLD)
    Jir = cmap * (1.0 - jnp.eye(L))
    Kir = K[sigma_i, :]
    Kss = Kir[:, sigma_i]
    N = -jnp.sum(jnp.sum(Kss * Jir, axis=0) + H[sigma_i, jnp.arange(L)])
    Kli = K[:, sigma_i]
    D = jnp.sum(jnp.log(jnp.sum(jnp.exp(Kli @ Jir + H), axis=0)))
    total = w_b[0] * (N + D) + LAMBDA_H * jnp.sum(H * H)
    return total, total


if __name__ == "__main__":
    def make_inputs(L):
        key = jax.random.PRNGKey(0)
        kK, kH, k1, k2, k3, k4, ks, kw = jax.random.split(key, 8)
        # initialize(): K, H ~ standard normal (the /sqrt(..) result is
        # discarded in the source); symmetrize() makes K symmetric.
        K0 = jax.random.normal(kK, (Q, Q), jnp.float32)
        K0 = 0.5 * (K0 + K0.T)
        params = dict(
            K=K0,
            H=jax.random.normal(kH, (Q, L), jnp.float32),
            cos_alpha=jax.random.normal(k1, (L - 1,), jnp.float32),
            sin_alpha=jax.random.normal(k2, (L - 1,), jnp.float32),
            cos_beta=jax.random.normal(k3, (L - 1,), jnp.float32),
            sin_beta=jax.random.normal(k4, (L - 1,), jnp.float32),
        )
        sigma_i = jax.random.randint(ks, (L,), 0, Q)
        w_b = jnp.abs(jax.random.normal(kw, (1,), jnp.float32)) + 0.1
        return sigma_i, w_b, params

    # --- small case: single full-width tile (L = 16) -------------------------
    sigma_i, w_b, params = make_inputs(16)
    lp, lnr = jax.block_until_ready(log_loss_protein_forward(sigma_i, w_b, params))
    lp_ref, _ = _reference(sigma_i, w_b, params)
    assert jnp.isfinite(lp) and jnp.isfinite(lnr)
    assert jnp.allclose(lp, lp_ref, rtol=2e-2, atol=1e-1), (lp, lp_ref)
    assert jnp.allclose(lnr, lp_ref, rtol=2e-2, atol=1e-1), (lnr, lp_ref)

    # --- column-tiled path (grid > 1, padding + masking exercised) -----------
    sigma_i, w_b, params = make_inputs(160)
    lp, lnr = jax.block_until_ready(
        log_loss_protein_forward(sigma_i, w_b, params, col_tile=128))
    lp_ref, _ = _reference(sigma_i, w_b, params)
    assert jnp.isfinite(lp) and jnp.isfinite(lnr)
    assert jnp.allclose(lp, lp_ref, rtol=2e-2, atol=2e-1), (lp, lp_ref)

    print("KERNEL_OK")
</pallas_src>

<mosaic_0001>
module attributes {stable_mosaic.version = 11 : i64} {
  func.func @_loss_kernel(%arg0: i32, %arg1: memref<1x1xi32, #tpu.memory_space<vmem>>, %arg2: memref<1x1xf32, #tpu.memory_space<vmem>>, %arg3: memref<1x16xi32, #tpu.memory_space<vmem>>, %arg4: memref<1x16xi32, #tpu.memory_space<vmem>>, %arg5: memref<16x8xf32, #tpu.memory_space<vmem>>, %arg6: memref<8x16xf32, #tpu.memory_space<vmem>>, %arg7: memref<21x21xf32, #tpu.memory_space<vmem>>, %arg8: memref<21x16xf32, #tpu.memory_space<vmem>>, %arg9: memref<1x1xf32, #tpu.memory_space<vmem>>, %arg10: memref<1x1xf32, #tpu.memory_space<vmem>>, %arg11: memref<1x1xf32, #tpu.memory_space<vmem>>, %arg12: memref<1x1xf32, #tpu.memory_space<vmem>>) attributes {dimension_semantics = [#tpu.dimension_semantics<arbitrary>], iteration_bounds = array<i64: 1>, scalar_prefetch = 0 : i64, scratch_operands = 3 : i64, tpu.core_type = #tpu.core_type<tc>, window_params = [{pipeline_mode = #tpu.pipeline_mode<synchronous>, transform_indices = @transform_0, window_bounds = array<i64: 1, 1>}, {pipeline_mode = #tpu.pipeline_mode<synchronous>, transform_indices = @transform_1, window_bounds = array<i64: 1, 1>}, {pipeline_mode = #tpu.pipeline_mode<synchronous>, transform_indices = @transform_2, window_bounds = array<i64: 1, 16>}, {transform_indices = @transform_3, window_bounds = array<i64: 1, 16>}, {pipeline_mode = #tpu.pipeline_mode<synchronous>, transform_indices = @transform_4, window_bounds = array<i64: 16, 8>}, {transform_indices = @transform_5, window_bounds = array<i64: 8, 16>}, {pipeline_mode = #tpu.pipeline_mode<synchronous>, transform_indices = @transform_6, window_bounds = array<i64: 21, 21>}, {transform_indices = @transform_7, window_bounds = array<i64: 21, 16>}, {pipeline_mode = #tpu.pipeline_mode<synchronous>, transform_indices = @transform_8, window_bounds = array<i64: 1, 1>}]} {
    %c0_i32 = arith.constant 0 : i32
    %0 = arith.cmpi eq, %arg0, %c0_i32 : i32
    %1 = arith.extui %0 : i1 to i32
    %c0_i32_0 = arith.constant 0 : i32
    %2 = arith.cmpi ne, %1, %c0_i32_0 : i32
    scf.if %2 {
      %cst_49 = arith.constant 0.000000e+00 : f32
      %97 = vector.broadcast %cst_49 : f32 to vector<1x1xf32>
      %c0_50 = arith.constant 0 : index
      %c0_51 = arith.constant 0 : index
      %98 = vector.load %arg10[%c0_50, %c0_51] : memref<1x1xf32, #tpu.memory_space<vmem>>, vector<1x1xf32>
      tpu.vector_store %arg10[%c0_50, %c0_51], %97 {strides = array<i32>} : memref<1x1xf32, #tpu.memory_space<vmem>>, vector<1x1xf32>,
      %cst_52 = arith.constant 0.000000e+00 : f32
      %99 = vector.broadcast %cst_52 : f32 to vector<1x1xf32>
      %c0_53 = arith.constant 0 : index
      %c0_54 = arith.constant 0 : index
      %100 = vector.load %arg11[%c0_53, %c0_54] : memref<1x1xf32, #tpu.memory_space<vmem>>, vector<1x1xf32>
      tpu.vector_store %arg11[%c0_53, %c0_54], %99 {strides = array<i32>} : memref<1x1xf32, #tpu.memory_space<vmem>>, vector<1x1xf32>,
      %cst_55 = arith.constant 0.000000e+00 : f32
      %101 = vector.broadcast %cst_55 : f32 to vector<1x1xf32>
      %c0_56 = arith.constant 0 : index
      %c0_57 = arith.constant 0 : index
      %102 = vector.load %arg12[%c0_56, %c0_57] : memref<1x1xf32, #tpu.memory_space<vmem>>, vector<1x1xf32>
      tpu.vector_store %arg12[%c0_56, %c0_57], %101 {strides = array<i32>} : memref<1x1xf32, #tpu.memory_space<vmem>>, vector<1x1xf32>,
    } else {
    }
    %c0 = arith.constant 0 : index
    %c0_1 = arith.constant 0 : index
    %3 = vector.load %arg1[%c0, %c0_1] : memref<1x1xi32, #tpu.memory_space<vmem>>, vector<1x1xi32>
    %c16_i32 = arith.constant 16 : i32
    %4 = arith.muli %arg0, %c16_i32 : i32
    %5 = tpu.iota {dimensions = array<i32: 0>} : vector<16x16xi32>
    %6 = tpu.iota {dimensions = array<i32: 1>} : vector<16x16xi32>
    %7 = vector.broadcast %4 : i32 to vector<16x16xi32>
    %8 = arith.addi %7, %6 : vector<16x16xi32>
    %c0_2 = arith.constant 0 : index
    %c0_3 = arith.constant 0 : index
    %9 = vector.load %arg5[%c0_2, %c0_3] : memref<16x8xf32, #tpu.memory_space<vmem>>, vector<16x8xf32>
    %c0_4 = arith.constant 0 : index
    %c0_5 = arith.constant 0 : index
    %10 = vector.load %arg6[%c0_4, %c0_5] : memref<8x16xf32, #tpu.memory_space<vmem>>, vector<8x16xf32>
    %cst = arith.constant dense<0.000000e+00> : vector<16x16xf32>
    %11 = tpu.matmul %9, %10, %cst {dimension_numbers = #tpu.dot_dimension_numbers<[1], [0], [0], [1], [0, 0, 1, 1], [], []>} : vector<16x8xf32>, vector<8x16xf32>, vector<16x16xf32> -> vector<16x16xf32>
    %cst_6 = arith.constant 0.000000e+00 : f32
    %12 = vector.broadcast %cst_6 : f32 to vector<16x16xf32>
    %13 = arith.maximumf %11, %12 : vector<16x16xf32>
    %cst_7 = arith.constant 9.99999974E-5 : f32
    %14 = vector.broadcast %cst_7 : f32 to vector<16x16xf32>
    %15 = arith.addf %13, %14 : vector<16x16xf32>
    %16 = math.sqrt %15 : vector<16x16xf32>
    %cst_8 = arith.constant 3.500000e+00 : f32
    %17 = vector.broadcast %cst_8 : f32 to vector<16x16xf32>
    %18 = arith.subf %16, %17 : vector<16x16xf32>
    %cst_9 = arith.constant 3.000000e+01 : f32
    %19 = vector.broadcast %cst_9 : f32 to vector<16x16xf32>
    %20 = arith.minimumf %18, %19 : vector<16x16xf32>
    %21 = math.exp %20 : vector<16x16xf32>
    %cst_10 = arith.constant 1.000000e+00 : f32
    %22 = vector.broadcast %cst_10 : f32 to vector<16x16xf32>
    %23 = arith.addf %22, %21 : vector<16x16xf32>
    %24 = tpu.reciprocal %23 {approx = true} : vector<16x16xf32> -> vector<16x16xf32>
    %25 = vector.broadcast %3 : vector<1x1xi32> to vector<16x16xi32>
    %26 = arith.cmpi slt, %5, %25 : vector<16x16xi32>
    %27 = vector.broadcast %3 : vector<1x1xi32> to vector<16x16xi32>
    %28 = arith.cmpi slt, %8, %27 : vector<16x16xi32>
    %29 = arith.andi %26, %28 : vector<16x16xi1>
    %30 = arith.cmpi ne, %5, %8 : vector<16x16xi32>
    %31 = arith.andi %29, %30 : vector<16x16xi1>
    %cst_11 = arith.constant 0.000000e+00 : f32
    %32 = vector.broadcast %cst_11 : f32 to vector<16x16xf32>
    %33 = arith.select %31, %24, %32 : vector<16x16xi1>, vector<16x16xf32>
    %34 = arith.truncf %33 : vector<16x16xf32> to vector<16x16xbf16>
    %35 = tpu.iota {dimensions = array<i32: 0>} : vector<21x16xi32>
    %c0_12 = arith.constant 0 : index
    %c0_13 = arith.constant 0 : index
    %36 = vector.load %arg3[%c0_12, %c0_13] : memref<1x16xi32, #tpu.memory_space<vmem>>, vector<1x16xi32>
    %37 = vector.broadcast %36 : vector<1x16xi32> to vector<21x16xi32>
    %38 = arith.cmpi eq, %35, %37 : vector<21x16xi32>
    %39 = arith.extui %38 : vector<21x16xi1> to vector<21x16xi32>
    %40 = arith.sitofp %39 : vector<21x16xi32> to vector<21x16xf32>
    %c0_14 = arith.constant 0 : index
    %c0_15 = arith.constant 0 : index
    %41 = vector.load %arg7[%c0_14, %c0_15] : memref<21x21xf32, #tpu.memory_space<vmem>>, vector<21x21xf32>
    %cst_16 = arith.constant dense<0.000000e+00> : vector<21x16xf32>
    %42 = tpu.matmul %41, %40, %cst_16 {dimension_numbers = #tpu.dot_dimension_numbers<[1], [0], [0], [1], [0, 0, 1, 1], [], []>} : vector<21x21xf32>, vector<21x16xf32>, vector<21x16xf32> -> vector<21x16xf32>
    %43 = arith.truncf %42 : vector<21x16xf32> to vector<21x16xbf16>
    %cst_17 = arith.constant dense<0.000000e+00> : vector<21x16xf32>
    %44 = tpu.matmul %43, %34, %cst_17 {dimension_numbers = #tpu.dot_dimension_numbers<[1], [0], [0], [1], [0, 0, 1, 1], [], []>} : vector<21x16xbf16>, vector<16x16xbf16>, vector<21x16xf32> -> vector<21x16xf32>
    %c0_18 = arith.constant 0 : index
    %c0_19 = arith.constant 0 : index
    %45 = vector.load %arg8[%c0_18, %c0_19] : memref<21x16xf32, #tpu.memory_space<vmem>>, vector<21x16xf32>
    %46 = arith.addf %44, %45 : vector<21x16xf32>
    %47 = tpu.iota {dimensions = array<i32: 1>} : vector<1x16xi32>
    %48 = vector.broadcast %4 : i32 to vector<1x16xi32>
    %49 = arith.addi %48, %47 : vector<1x16xi32>
    %50 = vector.broadcast %3 : vector<1x1xi32> to vector<1x16xi32>
    %51 = arith.cmpi slt, %49, %50 : vector<1x16xi32>
    %52 = tpu.iota {dimensions = array<i32: 0>} : vector<21x16xi32>
    %c0_20 = arith.constant 0 : index
    %c0_21 = arith.constant 0 : index
    %53 = vector.load %arg4[%c0_20, %c0_21] : memref<1x16xi32, #tpu.memory_space<vmem>>, vector<1x16xi32>
    %54 = vector.broadcast %53 : vector<1x16xi32> to vector<21x16xi32>
    %55 = arith.cmpi eq, %52, %54 : vector<21x16xi32>
    %56 = arith.extui %55 : vector<21x16xi1> to vector<21x16xi32>
    %57 = arith.sitofp %56 : vector<21x16xi32> to vector<21x16xf32>
    %58 = arith.mulf %57, %46 : vector<21x16xf32>
    %cst_22 = arith.constant dense<0.000000e+00> : vector<16xf32>
    %59 = vector.multi_reduction <add>, %58, %cst_22 [0] : vector<21x16xf32> to vector<16xf32>
    %60 = vector.shape_cast %59 : vector<16xf32> to vector<1x16xf32>
    %c0_23 = arith.constant 0 : index
    %c0_24 = arith.constant 0 : index
    %61 = vector.load %arg10[%c0_23, %c0_24] : memref<1x1xf32, #tpu.memory_space<vmem>>, vector<1x1xf32>
    %cst_25 = arith.constant 0.000000e+00 : f32
    %62 = vector.broadcast %cst_25 : f32 to vector<1x16xf32>
    %63 = arith.select %51, %60, %62 : vector<1x16xi1>, vector<1x16xf32>
    %cst_26 = arith.constant dense<0.000000e+00> : vector<1xf32>
    %64 = vector.multi_reduction <add>, %63, %cst_26 [1] : vector<1x16xf32> to vector<1xf32>
    %65 = vector.shape_cast %64 : vector<1xf32> to vector<1x1xf32>
    %66 = arith.addf %61, %65 : vector<1x1xf32>
    %c0_27 = arith.constant 0 : index
    %c0_28 = arith.constant 0 : index
    %67 = vector.load %arg10[%c0_27, %c0_28] : memref<1x1xf32, #tpu.memory_space<vmem>>, vector<1x1xf32>
    tpu.vector_store %arg10[%c0_27, %c0_28], %66 {strides = array<i32>} : memref<1x1xf32, #tpu.memory_space<vmem>>, vector<1x1xf32>,
    %cst_29 = arith.constant dense<0xFF800000> : vector<16xf32>
    %68 = vector.multi_reduction <maximumf>, %46, %cst_29 [0] : vector<21x16xf32> to vector<16xf32>
    %69 = vector.shape_cast %68 : vector<16xf32> to vector<1x16xf32>
    %70 = vector.broadcast %69 : vector<1x16xf32> to vector<21x16xf32>
    %71 = arith.subf %46, %70 : vector<21x16xf32>
    %72 = math.exp %71 : vector<21x16xf32>
    %cst_30 = arith.constant dense<0.000000e+00> : vector<16xf32>
    %73 = vector.multi_reduction <add>, %72, %cst_30 [0] : vector<21x16xf32> to vector<16xf32>
    %74 = vector.shape_cast %73 : vector<16xf32> to vector<1x16xf32>
    %75 = math.log %74 : vector<1x16xf32>
    %76 = arith.addf %69, %75 : vector<1x16xf32>
    %c0_31 = arith.constant 0 : index
    %c0_32 = arith.constant 0 : index
    %77 = vector.load %arg11[%c0_31, %c0_32] : memref<1x1xf32, #tpu.memory_space<vmem>>, vector<1x1xf32>
    %cst_33 = arith.constant 0.000000e+00 : f32
    %78 = vector.broadcast %cst_33 : f32 to vector<1x16xf32>
    %79 = arith.select %51, %76, %78 : vector<1x16xi1>, vector<1x16xf32>
    %cst_34 = arith.constant dense<0.000000e+00> : vector<1xf32>
    %80 = vector.multi_reduction <add>, %79, %cst_34 [1] : vector<1x16xf32> to vector<1xf32>
    %81 = vector.shape_cast %80 : vector<1xf32> to vector<1x1xf32>
    %82 = arith.addf %77, %81 : vector<1x1xf32>
    %c0_35 = arith.constant 0 : index
    %c0_36 = arith.constant 0 : index
    %83 = vector.load %arg11[%c0_35, %c0_36] : memref<1x1xf32, #tpu.memory_space<vmem>>, vector<1x1xf32>
    tpu.vector_store %arg11[%c0_35, %c0_36], %82 {strides = array<i32>} : memref<1x1xf32, #tpu.memory_space<vmem>>, vector<1x1xf32>,
    %c0_37 = arith.constant 0 : index
    %c0_38 = arith.constant 0 : index
    %84 = vector.load %arg8[%c0_37, %c0_38] : memref<21x16xf32, #tpu.memory_space<vmem>>, vector<21x16xf32>
    %c0_39 = arith.constant 0 : index
    %c0_40 = arith.constant 0 : index
    %85 = vector.load %arg8[%c0_39, %c0_40] : memref<21x16xf32, #tpu.memory_space<vmem>>, vector<21x16xf32>
    %86 = arith.mulf %84, %85 : vector<21x16xf32>
    %c0_41 = arith.constant 0 : index
    %c0_42 = arith.constant 0 : index
    %87 = vector.load %arg12[%c0_41, %c0_42] : memref<1x1xf32, #tpu.memory_space<vmem>>, vector<1x1xf32>
    %cst_43 = arith.constant dense<0.000000e+00> : vector<21xf32>
    %88 = vector.multi_reduction <add>, %86, %cst_43 [1] : vector<21x16xf32> to vector<21xf32>
    %89 = vector.shape_cast %88 : vector<21xf32> to vector<21x1xf32>
    %cst_44 = arith.constant dense<0.000000e+00> : vector<1xf32>
    %90 = vector.multi_reduction <add>, %89, %cst_44 [0] : vector<21x1xf32> to vector<1xf32>
    %91 = vector.shape_cast %90 : vector<1xf32> to vector<1x1xf32>
    %92 = arith.addf %87, %91 : vector<1x1xf32>
    %c0_45 = arith.constant 0 : index
    %c0_46 = arith.constant 0 : index
    %93 = vector.load %arg12[%c0_45, %c0_46] : memref<1x1xf32, #tpu.memory_space<vmem>>, vector<1x1xf32>
    tpu.vector_store %arg12[%c0_45, %c0_46], %92 {strides = array<i32>} : memref<1x1xf32, #tpu.memory_space<vmem>>, vector<1x1xf32>,
    %c0_i32_47 = arith.constant 0 : i32
    %94 = arith.cmpi eq, %arg0, %c0_i32_47 : i32
    %95 = arith.extui %94 : i1 to i32
    %c0_i32_48 = arith.constant 0 : i32
    %96 = arith.cmpi ne, %95, %c0_i32_48 : i32
    scf.if %96 {
      %c0_49 = arith.constant 0 : index
      %c0_50 = arith.constant 0 : index
      %97 = vector.load %arg2[%c0_49, %c0_50] : memref<1x1xf32, #tpu.memory_space<vmem>>, vector<1x1xf32>
      %c0_51 = arith.constant 0 : index
      %c0_52 = arith.constant 0 : index
      %98 = vector.load %arg11[%c0_51, %c0_52] : memref<1x1xf32, #tpu.memory_space<vmem>>, vector<1x1xf32>
      %c0_53 = arith.constant 0 : index
      %c0_54 = arith.constant 0 : index
      %99 = vector.load %arg10[%c0_53, %c0_54] : memref<1x1xf32, #tpu.memory_space<vmem>>, vector<1x1xf32>
      %100 = arith.subf %98, %99 : vector<1x1xf32>
      %101 = arith.mulf %97, %100 : vector<1x1xf32>
      %c0_55 = arith.constant 0 : index
      %c0_56 = arith.constant 0 : index
      %102 = vector.load %arg12[%c0_55, %c0_56] : memref<1x1xf32, #tpu.memory_space<vmem>>, vector<1x1xf32>
      %cst_57 = arith.constant 1.400000e-03 : f32
      %103 = vector.broadcast %cst_57 : f32 to vector<1x1xf32>
      %104 = arith.mulf %103, %102 : vector<1x1xf32>
      %105 = arith.addf %101, %104 : vector<1x1xf32>
      %c0_58 = arith.constant 0 : index
      %c0_59 = arith.constant 0 : index
      %106 = vector.load %arg9[%c0_58, %c0_59] : memref<1x1xf32, #tpu.memory_space<vmem>>, vector<1x1xf32>
      tpu.vector_store %arg9[%c0_58, %c0_59], %105 {strides = array<i32>} : memref<1x1xf32, #tpu.memory_space<vmem>>, vector<1x1xf32>,
    } else {
    }
    return
  }
  func.func @transform_0(%arg0: i32) -> (i32, i32) {
    %c0_i32 = arith.constant 0 : i32
    %c0_i32_0 = arith.constant 0 : i32
    %c0_i32_1 = arith.constant 0 : i32
    return %c0_i32, %c0_i32_0 : i32, i32
  }
  func.func @transform_1(%arg0: i32) -> (i32, i32) {
    %c0_i32 = arith.constant 0 : i32
    %c0_i32_0 = arith.constant 0 : i32
    %c0_i32_1 = arith.constant 0 : i32
    return %c0_i32, %c0_i32_0 : i32, i32
  }
  func.func @transform_2(%arg0: i32) -> (i32, i32) {
    %c0_i32 = arith.constant 0 : i32
    %c0_i32_0 = arith.constant 0 : i32
    %c0_i32_1 = arith.constant 0 : i32
    return %c0_i32, %c0_i32_0 : i32, i32
  }
  func.func @transform_3(%arg0: i32) -> (i32, i32) {
    %c0_i32 = arith.constant 0 : i32
    %c0_i32_0 = arith.constant 0 : i32
    return %c0_i32, %arg0 : i32, i32
  }
  func.func @transform_4(%arg0: i32) -> (i32, i32) {
    %c0_i32 = arith.constant 0 : i32
    %c0_i32_0 = arith.constant 0 : i32
    %c0_i32_1 = arith.constant 0 : i32
    return %c0_i32, %c0_i32_0 : i32, i32
  }
  func.func @transform_5(%arg0: i32) -> (i32, i32) {
    %c0_i32 = arith.constant 0 : i32
    %c0_i32_0 = arith.constant 0 : i32
    return %c0_i32, %arg0 : i32, i32
  }
  func.func @transform_6(%arg0: i32) -> (i32, i32) {
    %c0_i32 = arith.constant 0 : i32
    %c0_i32_0 = arith.constant 0 : i32
    %c0_i32_1 = arith.constant 0 : i32
    return %c0_i32, %c0_i32_0 : i32, i32
  }
  func.func @transform_7(%arg0: i32) -> (i32, i32) {
    %c0_i32 = arith.constant 0 : i32
    %c0_i32_0 = arith.constant 0 : i32
    return %c0_i32, %arg0 : i32, i32
  }
  func.func @transform_8(%arg0: i32) -> (i32, i32) {
    %c0_i32 = arith.constant 0 : i32
    %c0_i32_0 = arith.constant 0 : i32
    %c0_i32_1 = arith.constant 0 : i32
    return %c0_i32, %c0_i32_0 : i32, i32
  }
}

</mosaic_0001>

<llo_original>
// kernel: tpu_custom_call.1
$region0: #{tpu_custom_call.1}
  #allocation0 [shape = 'u32[]', space=smem, size = 0x4, offset = 0x4, fixed_abs, tag = 'smem constant byte address 0x4 - core index']
  #allocation1 [shape = 'u32[72,128]{1,0:T(1,128)}', space=vmem, size = 0x9000, scoped, tag = 'internal scratch']
  #allocation2 [shape = 'f32[1,1]{1,0:T(1,128)}', space=vmem, size = 0x200, scoped, tag = 'scratch operand']
  #allocation3 [shape = 'f32[1,1]{1,0:T(1,128)}', space=vmem, size = 0x200, scoped, tag = 'scratch operand']
  #allocation4 [shape = 'f32[1,1]{1,0:T(1,128)}', space=vmem, size = 0x200, scoped, tag = 'scratch operand']
  #allocation5 [shape = 's32[1,1]{1,0:T(1,128)S(1)}', space=vmem, size = 0x200, scoped, tag = 'scoped memory for tpu_custom_call.1']
  #allocation6 [shape = 'f32[1,1]{1,0:T(1,128)S(1)}', space=vmem, size = 0x200, scoped, tag = 'scoped memory for tpu_custom_call.1']
  %s0 = inlined_call_operand.<no memory space> [shape: s32[1,1], index: 0, kind: input, shape index: {}]
  %s1 = inlined_call_operand.<no memory space> [shape: f32[1,1], index: 1, kind: input, shape index: {}]
  %s2 = inlined_call_operand.vmem [shape: s32[1,16], index: 2, kind: input, shape index: {}]
  %s3 = inlined_call_operand.vmem [shape: s32[1,16], index: 3, kind: input, shape index: {}]
  %s4 = inlined_call_operand.vmem [shape: f32[16,8], index: 4, kind: input, shape index: {}]
  %s5 = inlined_call_operand.vmem [shape: f32[8,16], index: 5, kind: input, shape index: {}]
  %s6 = inlined_call_operand.vmem [shape: f32[21,21], index: 6, kind: input, shape index: {}]
  %s7 = inlined_call_operand.vmem [shape: f32[21,16], index: 7, kind: input, shape index: {}]
  %s8 = inlined_call_operand.hbm [shape: f32[1,1], index: 8, kind: output, shape index: {}]
  %s9 = sld [smem:[#allocation0]]
  $region50: #{tpu_custom_call.1} parent=0
    _
  %s11 = ssub.s32 1, %s9
  %s12 = scalar_select 0, %s11, %s9
  %v13 = vstv %s0
  %14 = vst [vmem:[#allocation5] sm:$0x1] %v13
  %v15 = vstv %s1
  %16 = vst [vmem:[#allocation6] sm:$0x1] %v15
  $region1: #{tpu_custom_call.1} parent=0
    #allocation7 [shape = 'u8[512]{0}', space=vmem, size = 0x400, scoped, tag = 'output window, operand 0, single buffered']
    #allocation8 [shape = 's32[1]{0}', space=sflag, size = 0x4, scoped, tag = 'scoped memory for tpu_custom_call.1']
    %17 = vsyncpa [#allocation8], 0
    // Predicated region
    $region2: #{tpu_custom_call.1} parent=1 // pred_check
      _
    $region3: #{tpu_custom_call.1} parent=1 // pred_check_branch
      %19 = sbr.rel (0) target = $region5
    $region4: #{tpu_custom_call.1} parent=1 // pred_region
      _
    $region5: #{tpu_custom_call.1} parent=1 // pred_fallthru
      _
    // Predicated region
    $region6: #{tpu_custom_call.1} parent=1 // pred_check
      _
    $region7: #{tpu_custom_call.1} parent=1 // pred_check_branch
      %21 = sbr.rel (0) target = $region9
    $region8: #{tpu_custom_call.1} parent=1 // pred_region
      _
    $region9: #{tpu_custom_call.1} parent=1 // pred_fallthru
      _
    // Predicated region
    $region10: #{tpu_custom_call.1} parent=1 // pred_check
      _
    $region11: #{tpu_custom_call.1} parent=1 // pred_check_branch
      %23 = sbr.rel (0) target = $region13
    $region12: #{tpu_custom_call.1} parent=1 // pred_region
      _
    $region13: #{tpu_custom_call.1} parent=1 // pred_fallthru
      _
    // Predicated region
    $region14: #{tpu_custom_call.1} parent=1 // pred_check
      _
    $region15: #{tpu_custom_call.1} parent=1 // pred_check_branch
      %25 = sbr.rel (0) target = $region17
    $region16: #{tpu_custom_call.1} parent=1 // pred_region
      _
    $region17: #{tpu_custom_call.1} parent=1 // pred_fallthru
      _
    // Predicated region
    $region18: #{tpu_custom_call.1} parent=1 // pred_check
      _
    $region19: #{tpu_custom_call.1} parent=1 // pred_check_branch
      %27 = sbr.rel (0) target = $region21
    $region20: #{tpu_custom_call.1} parent=1 // pred_region
      _
    $region21: #{tpu_custom_call.1} parent=1 // pred_fallthru
      _
    // Predicated region
    $region22: #{tpu_custom_call.1} parent=1 // pred_check
      _
    $region23: #{tpu_custom_call.1} parent=1 // pred_check_branch
      %29 = sbr.rel (0) target = $region25
    $region24: #{tpu_custom_call.1} parent=1 // pred_region
      _
    $region25: #{tpu_custom_call.1} parent=1 // pred_fallthru
      _
    // Predicated region
    $region26: #{tpu_custom_call.1} parent=1 // pred_check
      _
    $region27: #{tpu_custom_call.1} parent=1 // pred_check_branch
      %31 = sbr.rel (0) target = $region29
    $region28: #{tpu_custom_call.1} parent=1 // pred_region
      _
    $region29: #{tpu_custom_call.1} parent=1 // pred_fallthru
      _
    // Predicated region
    $region30: #{tpu_custom_call.1} parent=1 // pred_check
      _
    $region31: #{tpu_custom_call.1} parent=1 // pred_check_branch
      %33 = sbr.rel (0) target = $region33
    $region32: #{tpu_custom_call.1} parent=1 // pred_region
      _
    $region33: #{tpu_custom_call.1} parent=1 // pred_fallthru
      _
    %p35 = scmp.eq.s32.totalorder 0, 0
    // Predicated region
    $region34: #{tpu_custom_call.1} parent=1 // pred_check
      %p36 = pneg %p35
    $region35: #{tpu_custom_call.1} parent=1 // pred_check_branch
      %38 = sbr.rel (%p36) target = $region37
    $region36: #{tpu_custom_call.1} parent=1 // pred_region
      %vm39 = vcmask 0
      %40 = vst.msk [vmem:[#allocation2] sm:$0x1] %vm39, 0.0
      %41 = vst.msk [vmem:[#allocation3] sm:$0x1] %vm39, 0.0
      %42 = vst.msk [vmem:[#allocation4] sm:$0x1] %vm39, 0.0
    $region37: #{tpu_custom_call.1} parent=1 // pred_fallthru
      _
    %v43 = vld [vmem:[#allocation5] sm:$0x1]
    %s44 = smul.u32 0, 16
    %v45 = vlaneseq
    %v46 = vshrl.u32 %v45, 7
    %v47 = vadd.s32 %v46, 8
    %v48 = vlaneseq
    %v49 = vand.u32 %v48, 127
    %v50 = vstv %s44
    %v51 = vadd.s32 %v50, %v49
    %v52 = vld [vmem:[%s4] sm:$0xff]
    %v53 = vld [vmem:[%s4 + $0x8] sm:$0xff]
    %v54 = vld [vmem:[%s5] sm:$0xff]
    %vm55 = vcmask 64512
    %v57 = vsel %vm55, %v52, 0
    %v60 = vsel %vm55, %v53, 0
    %62 = vmatpush.msra.mxu0 0.0
    %63 = vmatpush.msra.mxu0 0.0
    %64 = vmatpush.msra.mxu0 0.0
    %65 = vmatpush.msra.mxu0 0.0
    %66 = vmatpush.msra.mxu0 0.0
    %67 = vmatpush.msra.mxu0 0.0
    %68 = vmatpush.msra.mxu0 0.0
    %69 = vmatpush.msra.mxu0 0.0
    %70 = vmatpush.msra.mxu0 0.0
    %71 = vmatpush.msra.mxu0 0.0
    %72 = vmatpush.msra.mxu0 0.0
    %73 = vmatpush.msra.mxu0 0.0
    %74 = vmatpush.msra.mxu0 0.0
    %75 = vmatpush.msra.mxu0 0.0
    %76 = vmatpush.msra.mxu0 0.0
    %77 = vmatpush.msra.mxu0 %v54
    %78 = vmatmul.f32.gmra.mxu0 %v57
    %v79 = vpop.f32.mrf.mxu0
    %v80 = vadd.f32 0.0, %v79
    %81 = vmatmul.f32.gmra.mxu0 %v60
    %v82 = vpop.f32.mrf.mxu0
    %v83 = vadd.f32 0.0, %v82
    %84 = vdwg.mxu0
    %v85 = vmax.f32 %v80, 0.0
    %v86 = vmax.f32 %v83, 0.0
    %v87 = vadd.f32 %v85, 0.0001
    %v88 = vadd.f32 %v86, 0.0001
    %v89 = vrsqrt.pop %v87
    %v90 = vmul.f32 %v89, %v87
    %v91 = vmul.f32 %v90, %v89
    %v92 = vmul.f32 0.5, %v91
    %v93 = vsub.f32 1.5, %v92
    %v94 = vmul.f32 %v89, %v93
    %v95 = vmul.f32 %v87, %v94
    %vm96 = vcmp.eq.f32.partialorder %v87, inf
    %v97 = vsel %vm96, %v87, %v95
    %vm98 = vcmp.eq.f32.partialorder %v87, 0.0
    %v99 = vand.u32 %v87, 2147483648
    %v100 = vsel %vm98, %v99, %v97
    %v101 = vrsqrt.pop %v88
    %v102 = vmul.f32 %v101, %v88
    %v103 = vmul.f32 %v102, %v101
    %v104 = vmul.f32 0.5, %v103
    %v105 = vsub.f32 1.5, %v104
    %v106 = vmul.f32 %v101, %v105
    %v107 = vmul.f32 %v88, %v106
    %vm108 = vcmp.eq.f32.partialorder %v88, inf
    %v109 = vsel %vm108, %v88, %v107
    %vm110 = vcmp.eq.f32.partialorder %v88, 0.0
    %v111 = vand.u32 %v88, 2147483648
    %v112 = vsel %vm110, %v111, %v109
    %v113 = vsub.f32 %v100, 3.5
    %v114 = vsub.f32 %v112, 3.5
    %v115 = vmin.f32 %v113, 30.0
    %v116 = vmin.f32 %v114, 30.0
    %v117 = vmul.f32 %v115, 1.442695
    %v118 = vpow.pop %v117
    %v119 = vmul.f32 %v116, 1.442695
    %v120 = vpow.pop %v119
    %v121 = vadd.f32 %v118, 1.0
    %v122 = vadd.f32 %v120, 1.0
    %v123 = vrcp.pop %v121
    %v124 = vrcp.pop %v122
    %v125 = vperm.slane %v43, 0
    %126 = vset.pattern.permute.xlu0 0
    %127 = vperm.xlu0 %126, %v125
    %v128 = vpop.permute.xlu0 %127
    %vm129 = vcmp.lt.s32.totalorder %v46, %v128
    %vm130 = vcmp.lt.s32.totalorder %v47, %v128
    %vm131 = vcmp.lt.s32.totalorder %v51, %v128
    %vm132 = vmand %vm129, %vm131
    %vm133 = vmand %vm130, %vm131
    %vm134 = vcmp.ne.s32.totalorder %v46, %v51
    %vm135 = vcmp.ne.s32.totalorder %v47, %v51
    %vm136 = vmand %vm132, %vm134
    %vm137 = vmand %vm133, %vm135
    %v138 = vsel %vm136, %v123, 0.0
    %v139 = vsel %vm137, %v124, 0.0
    %v140 = vpack.c.bf16 %v139, %v138
    %v141 = vadd.s32 %v46, 16
    %v142 = vld [vmem:[%s2] sm:$0x1]
    %v143 = vperm.slane %v142, 0
    %vm144 = vcmp.eq.s32.totalorder %v46, %v143
    %vm145 = vcmp.eq.s32.totalorder %v47, %v143
    %vm146 = vcmp.eq.s32.totalorder %v141, %v143
    %v147 = vsel %vm144, 1, 0
    %v148 = vsel %vm145, 1, 0
    %v149 = vsel %vm146, 1, 0
    %v150 = vcvt.s32.f32 %v147
    %v151 = vcvt.s32.f32 %v148
    %v152 = vcvt.s32.f32 %v149
    %v153 = vld [vmem:[%s6] sm:$0xff]
    %v154 = vld [vmem:[%s6 + $0x8] sm:$0xff]
    %v155 = vld [vmem:[%s6 + $0x10] sm:$0x1f]
    %vm156 = vcmask 171008
    %v158 = vsel %vm156, %v153, 0
    %v161 = vsel %vm156, %v154, 0
    %v164 = vsel %vm156, %v155, 0
    %vm166 = vcmask 1044480
    %v168 = vsel %vm166, %v152, 0
    %170 = vmatpush.msra.mxu0 0.0
    %171 = vmatpush.msra.mxu0 0.0
    %172 = vmatpush.msra.mxu0 0.0
    %173 = vmatpush.msra.mxu0 0.0
    %174 = vmatpush.msra.mxu0 0.0
    %175 = vmatpush.msra.mxu0 0.0
    %176 = vmatpush.msra.mxu0 0.0
    %177 = vmatpush.msra.mxu0 0.0
    %178 = vmatpush.msra.mxu0 0.0
    %179 = vmatpush.msra.mxu0 0.0
    %180 = vmatpush.msra.mxu0 0.0
    %181 = vmatpush.msra.mxu0 0.0
    %182 = vmatpush.msra.mxu0 0.0
    %183 = vmatpush.msra.mxu0 %v168
    %184 = vmatpush.msra.mxu0 %v151
    %185 = vmatpush.msra.mxu0 %v150
    %186 = vmatmul.f32.gmra.mxu0 %v158
    %v187 = vpop.f32.mrf.mxu0
    %v188 = vadd.f32 0.0, %v187
    %189 = vmatmul.f32.gmra.mxu0 %v161
    %v190 = vpop.f32.mrf.mxu0
    %v191 = vadd.f32 0.0, %v190
    %192 = vmatmul.f32.gmra.mxu0 %v164
    %v193 = vpop.f32.mrf.mxu0
    %v194 = vadd.f32 0.0, %v193
    %195 = vdwg.mxu0
    %v196 = vpack.c.bf16 %v191, %v188
    %v197 = vpack.c.bf16 %v194, %v194
    %v198 = vld [vmem:[%s7] sm:$0xff]
    %v199 = vld [vmem:[%s7 + $0x8] sm:$0xff]
    %v200 = vld [vmem:[%s7 + $0x10] sm:$0x1f]
    %vm201 = vcmask 130048
    %v203 = vsel %vm201, %v196, 0
    %v206 = vsel %vm201, %v197, 0
    %208 = vmatpush.bf16.msra.mxu0 0
    %209 = vmatpush.bf16.msra.mxu0 0
    %210 = vmatpush.bf16.msra.mxu0 0
    %211 = vmatpush.bf16.msra.mxu0 0
    %212 = vmatpush.bf16.msra.mxu0 0
    %213 = vmatpush.bf16.msra.mxu0 0
    %214 = vmatpush.bf16.msra.mxu0 0
    %215 = vmatpush.bf16.msra.mxu0 %v140
    %216 = vmatmul.bf16.gmra.mxu0 %v203
    %v217 = vpop.f32.mrf.mxu0
    %v218 = vadd.f32 %v198, %v217
    %v219 = vpop.f32.mrf.mxu0
    %v220 = vadd.f32 %v199, %v219
    %221 = vmatmul.bf16.gmra.mxu0 %v206
    %v222 = vpop.f32.mrf.mxu0
    %v223 = vadd.f32 %v200, %v222
    %v224 = vpop.f32.mrf.mxu0
    %225 = vdwg.mxu0
    %226 = vset.pattern.permute.xlu0 0
    %227 = vperm.xlu0 %226, %v43
    %v228 = vpop.permute.xlu0 %227
    %v229 = vperm.slane %v228, 0
    %vm230 = vcmp.lt.s32.totalorder %v51, %v229
    %v231 = vld [vmem:[%s3] sm:$0x1]
    %v232 = vperm.slane %v231, 0
    %vm233 = vcmp.eq.s32.totalorder %v46, %v232
    %vm234 = vcmp.eq.s32.totalorder %v47, %v232
    %vm235 = vcmp.eq.s32.totalorder %v141, %v232
    %v236 = vsel %vm233, 1, 0
    %v237 = vsel %vm234, 1, 0
    %v238 = vsel %vm235, 1, 0
    %v239 = vcvt.s32.f32 %v236
    %v240 = vcvt.s32.f32 %v237
    %v241 = vcvt.s32.f32 %v238
    %v242 = vmul.f32 %v239, %v218
    %v243 = vmul.f32 %v240, %v220
    %v244 = vmul.f32 %v241, %v223
    %v245 = vsel %vm201, %v242, 0.0
    %v246 = vsel %vm201, %v243, 0.0
    %v247 = vadd.f32 %v245, %v246
    %vm248 = vcmask 126976
    %v249 = vsel %vm248, %v244, 0.0
    %v250 = vadd.f32 %v247, %v249
    %v251 = vrot.slane %v250, 4
    %v252 = vadd.f32 %v250, %v251
    %v253 = vrot.slane %v252, 2
    %v254 = vadd.f32 %v252, %v253
    %v255 = vrot.slane %v254, 1
    %v256 = vadd.f32 %v254, %v255
    %v257 = vld [vmem:[#allocation2] sm:$0x1]
    %v258 = vsel %vm230, %v256, 0.0
    %v259 = vsel %vm201, %v258, 0.0
    %260 = vadd.xlane.f32.xlu0 %v259
    %v261 = vpop.xlane.xlu0 %260
    %v262 = vadd.f32 %v257, %v261
    %vm263 = vcmask 0
    %264 = vst.msk [vmem:[#allocation2] sm:$0x1] %vm263, %v262
    %v265 = vsel %vm201, %v218, -inf
    %v266 = vsel %vm201, %v220, -inf
    %v267 = vsel %vm248, %v223, -inf
    %v268 = vmax.f32 %v265, %v266
    %v269 = vmax.f32 %v268, %v267
    %v270 = vrot.slane %v269, 4
    %v271 = vmax.f32 %v269, %v270
    %v272 = vrot.slane %v271, 2
    %v273 = vmax.f32 %v271, %v272
    %v274 = vrot.slane %v273, 1
    %v275 = vmax.f32 %v273, %v274
    %v276 = vsub.f32 %v218, %v275
    %v277 = vsub.f32 %v220, %v275
    %v278 = vsub.f32 %v223, %v275
    %v279 = vmul.f32 %v276, 1.442695
    %v280 = vpow.pop %v279
    %v281 = vmul.f32 %v277, 1.442695
    %v282 = vpow.pop %v281
    %v283 = vmul.f32 %v278, 1.442695
    %v284 = vpow.pop %v283
    %v285 = vsel %vm201, %v280, 0.0
    %v286 = vsel %vm201, %v282, 0.0
    %v287 = vadd.f32 %v285, %v286
    %v288 = vsel %vm248, %v284, 0.0
    %v289 = vadd.f32 %v287, %v288
    %v290 = vrot.slane %v289, 4
    %v291 = vadd.f32 %v289, %v290
    %v292 = vrot.slane %v291, 2
    %v293 = vadd.f32 %v291, %v292
    %v294 = vrot.slane %v293, 1
    %v295 = vadd.f32 %v293, %v294
    %v296 = vlog2.pop %v295
    %v297 = vmul.f32 %v296, 0.6931472
    %v298 = vadd.f32 %v275, %v297
    %v299 = vld [vmem:[#allocation3] sm:$0x1]
    %v300 = vsel %vm230, %v298, 0.0
    %v301 = vsel %vm201, %v300, 0.0
    %302 = vadd.xlane.f32.xlu0 %v301
    %v303 = vpop.xlane.xlu0 %302
    %v304 = vadd.f32 %v299, %v303
    %305 = vst.msk [vmem:[#allocation3] sm:$0x1] %vm263, %v304
    %v306 = vld [vmem:[%s7] sm:$0xff]
    %v307 = vld [vmem:[%s7 + $0x8] sm:$0xff]
    %v308 = vld [vmem:[%s7 + $0x10] sm:$0x1f]
    %v309 = vmul.f32 %v306, %v306
    %v310 = vmul.f32 %v307, %v307
    %v311 = vmul.f32 %v308, %v308
    %v312 = vld [vmem:[#allocation4] sm:$0x1]
    %v313 = vsel %vm201, %v309, 0.0
    %314 = vadd.xlane.f32.xlu0 %v313
    %v315 = vpop.xlane.xlu0 %314
    %v316 = vsel %vm201, %v310, 0.0
    %317 = vadd.xlane.f32.xlu0 %v316
    %v318 = vpop.xlane.xlu0 %317
    %v319 = vsel %vm248, %v311, 0.0
    %320 = vadd.xlane.f32.xlu0 %v319
    %v321 = vpop.xlane.xlu0 %320
    %v322 = vadd.f32 %v315, %v318
    %v323 = vsel %vm166, %v321, 0.0
    %v324 = vadd.f32 %v322, %v323
    %v325 = vrot.slane %v324, 4
    %v326 = vadd.f32 %v324, %v325
    %v327 = vrot.slane %v326, 2
    %v328 = vadd.f32 %v326, %v327
    %v329 = vrot.slane %v328, 1
    %v330 = vadd.f32 %v328, %v329
    %v331 = vadd.f32 %v312, %v330
    %332 = vst.msk [vmem:[#allocation4] sm:$0x1] %vm263, %v331
    // Predicated region
    $region38: #{tpu_custom_call.1} parent=1 // pred_check
      %p333 = pneg %p35
    $region39: #{tpu_custom_call.1} parent=1 // pred_check_branch
      %335 = sbr.rel (%p333) target = $region41
    $region40: #{tpu_custom_call.1} parent=1 // pred_region
      %v336 = vld [vmem:[#allocation6] sm:$0x1]
      %v337 = vld [vmem:[#allocation3] sm:$0x1]
      %v338 = vld [vmem:[#allocation2] sm:$0x1]
      %v339 = vsub.f32 %v337, %v338
      %v340 = vmul.f32 %v336, %v339
      %v341 = vld [vmem:[#allocation4] sm:$0x1]
      %v342 = vmul.f32 %v341, 0.0014
      %v343 = vadd.f32 %v340, %v342
      %344 = vst.msk [vmem:[#allocation7] sm:$0x1] %vm263, %v343
    $region41: #{tpu_custom_call.1} parent=1 // pred_fallthru
      _
    // Predicated region
    $region42: #{tpu_custom_call.1} parent=1 // pred_check
      _
    $region43: #{tpu_custom_call.1} parent=1 // pred_check_branch
      %346 = sbr.rel (0) target = $region45
    $region44: #{tpu_custom_call.1} parent=1 // pred_region
      %348 = vsyncadd [#allocation8], 0
      %s350 = sshll.u32 [#allocation7], 4
      %s351 = int_to_ptr.vmem [resolvable:$true] %s350
      %s352 = sshll.u32 %s8, 4
      %s353 = int_to_ptr.hbm [resolvable:$true] %s352
      %355 = dma.vmem_to_hbm [thread:$0]  %s351, 16, %s353, [#allocation8]
    $region45: #{tpu_custom_call.1} parent=1 // pred_fallthru
      _
    // Predicated region
    $region46: #{tpu_custom_call.1} parent=1 // pred_check
      _
    $region47: #{tpu_custom_call.1} parent=1 // pred_check_branch
      %357 = sbr.rel (0) target = $region49
    $region48: #{tpu_custom_call.1} parent=1 // pred_region
      %359 = dma.done [#allocation8], 16
    $region49: #{tpu_custom_call.1} parent=1 // pred_fallthru
      _
    %360 = vsyncpa [#allocation8], 1

</llo_original>
